<compile_context>
chip_gen: v5e
topology: v5e:2x2
jax: 0.10.0
libtpu: 0.0.40
codegen_flags: <defaults>
</compile_context>

<pallas_src>
import functools

import jax
import jax.numpy as jnp
from jax.experimental import pallas as pl
from jax.experimental.pallas import tpu as pltpu

_LANE = 128
_SUBLANE = 8


def _round_up(x, m):
    return (x + m - 1) // m * m


def _physical_vmem_bytes():
    """Per-core VMEM capacity (128 MiB v5e/v6e, 64 MiB v7x); conservative fallback."""
    try:
        info = pltpu.get_tpu_info()
        for attr in ("vmem_capacity_bytes", "vmem_size_bytes", "vmem_bytes"):
            v = getattr(info, attr, None)
            if v:
                return int(v)
    except Exception:
        pass
    return 64 << 20


# ----------------------------------------------------------------------------
# Kernel: one (TM, TN) tile of  logits = x @ W_t + b   (+ optional fused sigmoid)
# ----------------------------------------------------------------------------
def _bernoulli_head_kernel(x_ref, wt_ref, b_ref, logits_ref, *probs_ref):
    acc = jnp.dot(x_ref[...], wt_ref[...],
                  preferred_element_type=jnp.float32) + b_ref[...]
    logits_ref[...] = acc.astype(logits_ref.dtype)
    if probs_ref:  # static (trace-time) check: fused sigmoid epilogue requested
        probs_ref[0][...] = jax.nn.sigmoid(acc)   # EUP slot; ~free next to the MXU pass


# ----------------------------------------------------------------------------
# Wrapper: tiling, VMEM budgeting, pallas_call
# ----------------------------------------------------------------------------
def _pick_tm(batch, max_tm):
    """Largest batch tile <= max_tm, preferring one that divides `batch` exactly."""
    max_tm = min(max_tm, 1024)
    if max_tm < _SUBLANE:
        return None
    if batch <= max_tm:
        return batch                                   # single full-batch tile, no pad
    for tm in (1024, 512, 256, 128, 64, 32, 16, _SUBLANE):
        if tm <= max_tm and batch % tm == 0:
            return tm                                  # divides B -> no wrapper-side pad
    return min(max_tm // _SUBLANE * _SUBLANE, 512)     # ragged batch: pad the last tile


@functools.partial(jax.jit, static_argnames=("num_outputs", "fuse_probs"))
def bernoulli_head(x, wt_pad, b2d_pad, num_outputs, fuse_probs=True):
    """x: (B, D_in); wt_pad: (D_in, D_out_p) in compute dtype; b2d_pad: (1, D_out_p) f32.

    Returns f32 logits (and probs when fuse_probs) of shape (B, num_outputs).
    """
    B, D_in = x.shape
    D_out_p = wt_pad.shape[1]                     # already a multiple of 128 (lane-dense)
    ebytes = jnp.dtype(x.dtype).itemsize
    wbytes = jnp.dtype(wt_pad.dtype).itemsize
    n_out = 2 if fuse_probs else 1

    # ---- generation-aware VMEM budget ----
    vmem_limit = min(_physical_vmem_bytes() // 2, 64 << 20)   # 64 MiB v5e/v6e, 32 MiB v7x
    budget = (vmem_limit * 3) // 4                            # headroom for compiler scratch

    w_full_bytes = 2 * (wbytes * D_in * D_out_p + 4 * D_out_p)      # W + bias, dbl-buffered
    row_bytes_full = 2 * (ebytes * D_in + 4 * D_out_p * n_out)      # per batch row, dbl-buf

    if w_full_bytes + row_bytes_full * _SUBLANE <= budget:
        # -------- resident-weight path: W / bias DMA'd from HBM exactly once --------
        max_tm = (budget - w_full_bytes) // row_bytes_full
        if B >= 1024:                    # ensure >= 2 batch blocks so both v7x TCs work
            max_tm = min(max_tm, B // 2)
        TM = _pick_tm(B, max_tm)
        B_p = _round_up(B, TM)
        grid = (B_p // TM,)
        in_specs = [
            pl.BlockSpec((TM, D_in), lambda i: (i, 0)),
            pl.BlockSpec((D_in, D_out_p), lambda i: (0, 0)),   # constant index -> 1 fetch
            pl.BlockSpec((1, D_out_p), lambda i: (0, 0)),
        ]

        def out_spec():
            return pl.BlockSpec((TM, D_out_p), lambda i: (i, 0))

        x_reads = 1
    else:
        # -------- column-tiled path: W too big for VMEM; keep W tile resident over batch --------
        TN = None
        for cand in (512, 256, _LANE):
            if D_out_p % cand:
                continue
            if (2 * (wbytes * D_in * cand + 4 * cand)
                    + 2 * (ebytes * D_in + 4 * cand * n_out) * _SUBLANE) <= budget:
                TN = cand
                break
        if TN is None:
            # TODO(synk): add a K (D_in) reduction grid axis + f32 VMEM accumulator so a
            # single (D_in, 128) weight tile never has to fit VMEM; fail loudly until then.
            raise ValueError(
                f"Bernoulli head: weight column tile (D_in={D_in}) exceeds the VMEM "
                f"budget ({budget} bytes); K-tiling not implemented.")
        w_tile_bytes = 2 * (wbytes * D_in * TN + 4 * TN)
        row_bytes = 2 * (ebytes * D_in + 4 * TN * n_out)
        max_tm = (budget - w_tile_bytes) // row_bytes
        TM = _pick_tm(B, max_tm)
        B_p = _round_up(B, TM)
        # Column axis OUTER / batch axis INNER: the W tile's block index is constant
        # across the inner axis, so it is not re-fetched per batch tile.
        grid = (D_out_p // TN, B_p // TM)
        in_specs = [
            pl.BlockSpec((TM, D_in), lambda j, i: (i, 0)),
            pl.BlockSpec((D_in, TN), lambda j, i: (0, j)),
            pl.BlockSpec((1, TN), lambda j, i: (0, j)),
        ]

        def out_spec():
            return pl.BlockSpec((TM, TN), lambda j, i: (i, j))

        x_reads = D_out_p // TN

    x_p = x if B_p == B else jnp.pad(x, ((0, B_p - B), (0, 0)))

    out_shapes = tuple(jax.ShapeDtypeStruct((B_p, D_out_p), jnp.float32)
                       for _ in range(n_out))
    out_specs = tuple(out_spec() for _ in range(n_out))

    cost = pl.CostEstimate(
        flops=2 * B_p * D_in * D_out_p,
        transcendentals=B_p * D_out_p if fuse_probs else 0,
        bytes_accessed=(x_reads * ebytes * B_p * D_in      # activations
                        + wbytes * D_in * D_out_p          # weight, read once
                        + 4 * D_out_p                      # bias
                        + 4 * n_out * B_p * D_out_p),      # logits (+ probs) written
    )

    outs = pl.pallas_call(
        _bernoulli_head_kernel,
        out_shape=out_shapes,
        grid=grid,
        in_specs=in_specs,
        out_specs=out_specs,
        compiler_params=pltpu.CompilerParams(
            dimension_semantics=("parallel",) * len(grid),
            vmem_limit_bytes=vmem_limit,
        ),
        cost_estimate=cost,
    )(x_p, wt_pad, b2d_pad)

    logits_p = outs[0]
    if B_p != B or D_out_p != num_outputs:
        logits = logits_p[:B, :num_outputs]
        probs = outs[1][:B, :num_outputs] if fuse_probs else None
    else:
        logits = logits_p
        probs = outs[1] if fuse_probs else None
    return (logits, probs) if fuse_probs else logits


# ----------------------------------------------------------------------------
# FixedBernoulli distribution glue (matches the torch FixedBernoulli methods)
# ----------------------------------------------------------------------------
class FixedBernoulli:
    def __init__(self, logits, probs=None):
        self.logits = logits
        self._probs = probs            # may be provided by the fused kernel epilogue

    @property
    def probs(self):
        if self._probs is None:
            self._probs = jax.nn.sigmoid(self.logits)
        return self._probs

    def mode(self):
        return (self.probs > 0.5).astype(jnp.float32)

    def entropy(self):
        l = self.logits
        p = self.probs
        ent = -(p * jax.nn.log_sigmoid(l) + (1.0 - p) * jax.nn.log_sigmoid(-l))
        return ent.sum(-1)

    def log_probs(self, actions):
        lp = (actions * jax.nn.log_sigmoid(self.logits)
              + (1.0 - actions) * jax.nn.log_sigmoid(-self.logits))
        return lp.reshape(actions.shape[0], -1).sum(-1)[:, None]


# ----------------------------------------------------------------------------
# Parameter init: orthogonal weight (gain=0.01), zero bias — packed for the kernel
# ----------------------------------------------------------------------------
def orthogonal_init(key, shape, gain):
    n_rows, n_cols = shape
    flat = jax.random.normal(key, (max(n_rows, n_cols), min(n_rows, n_cols)),
                             dtype=jnp.float32)
    q, r = jnp.linalg.qr(flat)
    d = jnp.diag(r)
    q = q * jnp.where(d >= 0.0, 1.0, -1.0)         # deterministic sign, never zero
    if n_rows < n_cols:
        q = q.T
    return gain * q[:n_rows, :n_cols]


def pack_linear_params(weight, bias, compute_dtype=jnp.float32):
    """weight: (D_out, D_in) torch layout; bias: (D_out,).

    Pre-transpose to (D_in, D_out), pad D_out up to a lane multiple (128) once,
    and store the weight in `compute_dtype` (match the activation dtype, e.g.
    bf16, to hit the native MXU rate and halve weight DMA bytes).  Bias stays
    f32 since it is added to the f32 accumulator.
    """
    d_out, d_in = weight.shape
    d_out_p = _round_up(d_out, _LANE)
    wt = jnp.zeros((d_in, d_out_p), compute_dtype).at[:, :d_out].set(
        weight.T.astype(compute_dtype))
    b2d = jnp.zeros((1, d_out_p), jnp.float32).at[:, :d_out].set(
        bias.astype(jnp.float32))
    return {"wt": wt, "b2d": b2d, "num_outputs": d_out}


def make_bernoulli_module(key, num_inputs, num_outputs, gain=0.01,
                          compute_dtype=jnp.float32):
    weight = orthogonal_init(key, (num_outputs, num_inputs), gain)  # torch layout
    bias = jnp.zeros((num_outputs,), dtype=jnp.float32)
    return weight, bias, pack_linear_params(weight, bias, compute_dtype)


def bernoulli_forward(x, params, fuse_probs=True):
    out = bernoulli_head(x, params["wt"], params["b2d"],
                         num_outputs=params["num_outputs"],
                         fuse_probs=fuse_probs)
    if fuse_probs:
        return FixedBernoulli(out[0], out[1])
    return FixedBernoulli(out)


# ----------------------------------------------------------------------------
if __name__ == "__main__":
    key = jax.random.PRNGKey(0)
    k_w, k_x = jax.random.split(key)

    batch, num_inputs, num_outputs = 8, 32, 16
    weight, bias, params = make_bernoulli_module(k_w, num_inputs, num_outputs,
                                                 gain=0.01)
    x = jax.random.normal(k_x, (batch, num_inputs), dtype=jnp.float32)

    # fused-sigmoid path (training-style: probs always consumed)
    dist = bernoulli_forward(x, params, fuse_probs=True)
    jax.block_until_ready(dist.logits)

    # Reference check in plain JAX
    ref_logits = x @ weight.T + bias
    ref_probs = jax.nn.sigmoid(ref_logits)
    assert jnp.allclose(dist.logits, ref_logits, atol=1e-5, rtol=1e-5)
    assert jnp.allclose(dist.probs, ref_probs, atol=1e-5, rtol=1e-5)

    # logits-only path (probs derived lazily) also goes through the kernel
    dist2 = bernoulli_forward(x, params, fuse_probs=False)
    jax.block_until_ready(dist2.logits)
    assert jnp.allclose(dist2.logits, ref_logits, atol=1e-5, rtol=1e-5)
    assert jnp.allclose(dist2.probs, ref_probs, atol=1e-5, rtol=1e-5)

    # exercise distribution helpers
    _ = jax.block_until_ready(dist.mode())
    _ = jax.block_until_ready(dist.entropy())
    _ = jax.block_until_ready(dist.log_probs(dist.mode()))

    print("KERNEL_OK")
</pallas_src>

<mosaic_0001>
module attributes {stable_mosaic.version = 11 : i64} {
  func.func @_bernoulli_head_kernel(%arg0: i32, %arg1: memref<8x32xf32, #tpu.memory_space<vmem>>, %arg2: memref<32x128xf32, #tpu.memory_space<vmem>>, %arg3: memref<1x128xf32, #tpu.memory_space<vmem>>, %arg4: memref<8x128xf32, #tpu.memory_space<vmem>>, %arg5: memref<8x128xf32, #tpu.memory_space<vmem>>) attributes {dimension_semantics = [#tpu.dimension_semantics<parallel>], iteration_bounds = array<i64: 1>, scalar_prefetch = 0 : i64, scratch_operands = 0 : i64, tpu.core_type = #tpu.core_type<tc>, window_params = [{transform_indices = @transform_0, window_bounds = array<i64: 8, 32>}, {pipeline_mode = #tpu.pipeline_mode<synchronous>, transform_indices = @transform_1, window_bounds = array<i64: 32, 128>}, {pipeline_mode = #tpu.pipeline_mode<synchronous>, transform_indices = @transform_2, window_bounds = array<i64: 1, 128>}, {transform_indices = @transform_3, window_bounds = array<i64: 8, 128>}, {transform_indices = @transform_4, window_bounds = array<i64: 8, 128>}]} {
    %c0 = arith.constant 0 : index
    %c0_0 = arith.constant 0 : index
    %0 = vector.load %arg1[%c0, %c0_0] : memref<8x32xf32, #tpu.memory_space<vmem>>, vector<8x32xf32>
    %c0_1 = arith.constant 0 : index
    %c0_2 = arith.constant 0 : index
    %1 = vector.load %arg2[%c0_1, %c0_2] : memref<32x128xf32, #tpu.memory_space<vmem>>, vector<32x128xf32>
    %cst = arith.constant dense<0.000000e+00> : vector<8x128xf32>
    %2 = tpu.matmul %0, %1, %cst {dimension_numbers = #tpu.dot_dimension_numbers<[1], [0], [0], [1], [0, 0, 1, 1], [], []>} : vector<8x32xf32>, vector<32x128xf32>, vector<8x128xf32> -> vector<8x128xf32>
    %c0_3 = arith.constant 0 : index
    %c0_4 = arith.constant 0 : index
    %3 = vector.load %arg3[%c0_3, %c0_4] : memref<1x128xf32, #tpu.memory_space<vmem>>, vector<1x128xf32>
    %4 = vector.broadcast %3 : vector<1x128xf32> to vector<8x128xf32>
    %5 = arith.addf %2, %4 : vector<8x128xf32>
    %c0_5 = arith.constant 0 : index
    %c0_6 = arith.constant 0 : index
    %6 = vector.load %arg4[%c0_5, %c0_6] : memref<8x128xf32, #tpu.memory_space<vmem>>, vector<8x128xf32>
    tpu.vector_store %arg4[%c0_5, %c0_6], %5 {strides = array<i32>} : memref<8x128xf32, #tpu.memory_space<vmem>>, vector<8x128xf32>,
    %7 = arith.negf %5 : vector<8x128xf32>
    %8 = math.exp %7 : vector<8x128xf32>
    %cst_7 = arith.constant 1.000000e+00 : f32
    %9 = vector.broadcast %cst_7 : f32 to vector<8x128xf32>
    %10 = arith.addf %9, %8 : vector<8x128xf32>
    %11 = arith.divf %9, %10 : vector<8x128xf32>
    %c0_8 = arith.constant 0 : index
    %c0_9 = arith.constant 0 : index
    %12 = vector.load %arg5[%c0_8, %c0_9] : memref<8x128xf32, #tpu.memory_space<vmem>>, vector<8x128xf32>
    tpu.vector_store %arg5[%c0_8, %c0_9], %11 {strides = array<i32>} : memref<8x128xf32, #tpu.memory_space<vmem>>, vector<8x128xf32>,
    return
  }
  func.func @transform_0(%arg0: i32) -> (i32, i32) {
    %c0_i32 = arith.constant 0 : i32
    %c0_i32_0 = arith.constant 0 : i32
    return %arg0, %c0_i32 : i32, i32
  }
  func.func @transform_1(%arg0: i32) -> (i32, i32) {
    %c0_i32 = arith.constant 0 : i32
    %c0_i32_0 = arith.constant 0 : i32
    %c0_i32_1 = arith.constant 0 : i32
    return %c0_i32, %c0_i32_0 : i32, i32
  }
  func.func @transform_2(%arg0: i32) -> (i32, i32) {
    %c0_i32 = arith.constant 0 : i32
    %c0_i32_0 = arith.constant 0 : i32
    %c0_i32_1 = arith.constant 0 : i32
    return %c0_i32, %c0_i32_0 : i32, i32
  }
  func.func @transform_3(%arg0: i32) -> (i32, i32) {
    %c0_i32 = arith.constant 0 : i32
    %c0_i32_0 = arith.constant 0 : i32
    return %arg0, %c0_i32 : i32, i32
  }
  func.func @transform_4(%arg0: i32) -> (i32, i32) {
    %c0_i32 = arith.constant 0 : i32
    %c0_i32_0 = arith.constant 0 : i32
    return %arg0, %c0_i32 : i32, i32
  }
}

</mosaic_0001>

<llo_original>
// kernel: bernoulli_head.1
$region0: #{bernoulli_head.1}
  #allocation0 [shape = 'u32[]', space=smem, size = 0x4, offset = 0x4, fixed_abs, tag = 'smem constant byte address 0x4 - core index']
  #allocation1 [shape = 'u32[72,128]{1,0:T(1,128)}', space=vmem, size = 0x9000, scoped, tag = 'internal scratch']
  %s0 = inlined_call_operand.hbm [shape: f32[8,32], index: 0, kind: input, shape index: {}]
  %s1 = inlined_call_operand.hbm [shape: f32[32,128], index: 1, kind: input, shape index: {}]
  %s2 = inlined_call_operand.vmem [shape: f32[1,128], index: 2, kind: input, shape index: {}]
  %s3 = inlined_call_operand.hbm [shape: f32[8,128], index: 3, kind: output, shape index: {0}]
  %s4 = inlined_call_operand.hbm [shape: f32[8,128], index: 4, kind: output, shape index: {1}]
  %5 = xla_tuple %s3, %s4
  %s6 = sld [smem:[#allocation0]]
  $region38: #{bernoulli_head.1} parent=0
    _
  %s8 = ssub.s32 1, %s6
  %s9 = scalar_select 0, %s8, %s6
  $region1: #{bernoulli_head.1} parent=0
    #allocation2 [shape = 'u8[4096]{0}', space=vmem, size = 0x1000, scoped, tag = 'input window, operand 0, single buffered']
    #allocation3 [shape = 's32[1]{0}', space=sflag, size = 0x4, scoped, tag = 'scoped memory for bernoulli_head.1']
    #allocation4 [shape = 's32[1]{0}', space=sflag, size = 0x4, scoped, tag = 'scoped memory for bernoulli_head.1']
    #allocation5 [shape = 'u8[16384]{0}', space=vmem, size = 0x4000, scoped, tag = 'input window, operand 1, single buffered']
    #allocation6 [shape = 's32[1]{0}', space=sflag, size = 0x4, scoped, tag = 'scoped memory for bernoulli_head.1']
    #allocation7 [shape = 'u8[4096]{0}', space=vmem, size = 0x1000, scoped, tag = 'output window, operand 0, single buffered']
    #allocation8 [shape = 'u8[4096]{0}', space=vmem, size = 0x1000, scoped, tag = 'output window, operand 1, single buffered']
    #allocation9 [shape = 's32[1]{0}', space=sflag, size = 0x4, scoped, tag = 'scoped memory for bernoulli_head.1']
    %10 = vsyncpa [#allocation3], 0
    %11 = vsyncpa [#allocation6], 0
    %12 = vsyncpa [#allocation4], 0
    %13 = vsyncpa [#allocation9], 0
    // Predicated region
    $region2: #{bernoulli_head.1} parent=1 // pred_check
      _
    $region3: #{bernoulli_head.1} parent=1 // pred_check_branch
      %15 = sbr.rel (0) target = $region5
    $region4: #{bernoulli_head.1} parent=1 // pred_region
      %17 = vsyncadd [#allocation3], 0
      %s19 = sshll.u32 %s0, 4
      %s20 = int_to_ptr.hbm [resolvable:$true] %s19
      %s21 = sshll.u32 [#allocation2], 4
      %s22 = int_to_ptr.vmem [resolvable:$true] %s21
      %24 = dma.hbm_to_vmem [thread:$0]  %s20, 128, %s22, [#allocation3]
    $region5: #{bernoulli_head.1} parent=1 // pred_fallthru
      _
    // Predicated region
    $region6: #{bernoulli_head.1} parent=1 // pred_check
      _
    $region7: #{bernoulli_head.1} parent=1 // pred_check_branch
      %26 = sbr.rel (0) target = $region9
    $region8: #{bernoulli_head.1} parent=1 // pred_region
      %28 = vsyncadd [#allocation6], 0
      %s29 = sshll.u32 %s1, 4
      %s30 = int_to_ptr.hbm [resolvable:$true] %s29
      %s31 = sshll.u32 [#allocation5], 4
      %s32 = int_to_ptr.vmem [resolvable:$true] %s31
      %37 = dma.hbm_to_vmem [thread:$0]  %s30, 512, %s32, [#allocation6], 128, 128, 8
    $region9: #{bernoulli_head.1} parent=1 // pred_fallthru
      _
    // Predicated region
    $region10: #{bernoulli_head.1} parent=1 // pred_check
      _
    $region11: #{bernoulli_head.1} parent=1 // pred_check_branch
      %39 = sbr.rel (0) target = $region13
    $region12: #{bernoulli_head.1} parent=1 // pred_region
      _
    $region13: #{bernoulli_head.1} parent=1 // pred_fallthru
      _
    // Predicated region
    $region14: #{bernoulli_head.1} parent=1 // pred_check
      _
    $region15: #{bernoulli_head.1} parent=1 // pred_check_branch
      %41 = sbr.rel (0) target = $region17
    $region16: #{bernoulli_head.1} parent=1 // pred_region
      %43 = dma.done [#allocation3], 128
    $region17: #{bernoulli_head.1} parent=1 // pred_fallthru
      _
    // Predicated region
    $region18: #{bernoulli_head.1} parent=1 // pred_check
      _
    $region19: #{bernoulli_head.1} parent=1 // pred_check_branch
      %45 = sbr.rel (0) target = $region21
    $region20: #{bernoulli_head.1} parent=1 // pred_region
      %47 = dma.done [#allocation6], 512
    $region21: #{bernoulli_head.1} parent=1 // pred_fallthru
      _
    %v48 = vld [vmem:[#allocation2] sm:$0xff]
    %v49 = vld [vmem:[#allocation5] sm:$0xff]
    %v50 = vld [vmem:[#allocation5 + $0x8] sm:$0xff]
    %v51 = vld [vmem:[#allocation5 + $0x10] sm:$0xff]
    %v52 = vld [vmem:[#allocation5 + $0x18] sm:$0xff]
    %v53 = vld [vmem:[%s2] sm:$0x1]
    %v55 = vperm.slane %v53, 0
    %vm57 = vcmask 261120
    %v59 = vsel %vm57, %v48, 0
    %61 = vmatpush.msra.mxu0 0.0
    %62 = vmatpush.msra.mxu0 0.0
    %63 = vmatpush.msra.mxu0 0.0
    %64 = vmatpush.msra.mxu0 0.0
    %65 = vmatpush.msra.mxu0 0.0
    %66 = vmatpush.msra.mxu0 0.0
    %67 = vmatpush.msra.mxu0 0.0
    %68 = vmatpush.msra.mxu0 0.0
    %69 = vmatpush.msra.mxu0 0.0
    %70 = vmatpush.msra.mxu0 0.0
    %71 = vmatpush.msra.mxu0 0.0
    %72 = vmatpush.msra.mxu0 0.0
    %73 = vmatpush.msra.mxu0 %v52
    %74 = vmatpush.msra.mxu0 %v51
    %75 = vmatpush.msra.mxu0 %v50
    %76 = vmatpush.msra.mxu0 %v49
    %77 = vmatmul.f32.gmra.mxu0 %v59
    %v78 = vpop.f32.mrf.mxu0
    %v79 = vadd.f32 %v55, %v78
    %80 = vdwg.mxu0
    %81 = vst [vmem:[#allocation7] sm:$0xff] %v79
    %v82 = vxor.u32 %v79, 2147483648
    %v83 = vmul.f32 %v82, 1.442695
    %v84 = vpow.pop %v83
    %v85 = vadd.f32 %v84, 1.0
    %v86 = vrcp.pop %v85
    %v87 = vmul.f32 %v85, %v86
    %v88 = vsub.f32 1.0, %v87
    %v89 = vmul.f32 %v86, %v88
    %v90 = vadd.f32 %v86, %v89
    %vm91 = vweird.f32 %v85
    %vm92 = vweird.f32 %v86
    %vm93 = vmor %vm91, %vm92
    %v94 = vsel %vm93, %v86, %v90
    %v95 = vand.u32 2147483647, %v85
    %vm96 = vcmp.eq.f32.partialorder %v95, 8.507059e+37
    %v97 = vand.u32 %v85, 2147483648
    %v98 = vor.u32 1.1754944e-38, %v97
    %v99 = vsel %vm96, %v98, %v94
    %v100 = vmul.f32 1.0, %v99
    %101 = vst [vmem:[#allocation8] sm:$0xff] %v100
    // Predicated region
    $region22: #{bernoulli_head.1} parent=1 // pred_check
      _
    $region23: #{bernoulli_head.1} parent=1 // pred_check_branch
      %103 = sbr.rel (0) target = $region25
    $region24: #{bernoulli_head.1} parent=1 // pred_region
      %105 = vsyncadd [#allocation4], 0
      %s107 = sshll.u32 [#allocation7], 4
      %s108 = int_to_ptr.vmem [resolvable:$true] %s107
      %s109 = sshll.u32 %s3, 4
      %s110 = int_to_ptr.hbm [resolvable:$true] %s109
      %112 = dma.vmem_to_hbm [thread:$0]  %s108, 128, %s110, [#allocation4]
    $region25: #{bernoulli_head.1} parent=1 // pred_fallthru
      _
    // Predicated region
    $region26: #{bernoulli_head.1} parent=1 // pred_check
      _
    $region27: #{bernoulli_head.1} parent=1 // pred_check_branch
      %114 = sbr.rel (0) target = $region29
    $region28: #{bernoulli_head.1} parent=1 // pred_region
      %116 = vsyncadd [#allocation9], 0
      %s118 = sshll.u32 [#allocation8], 4
      %s119 = int_to_ptr.vmem [resolvable:$true] %s118
      %s120 = sshll.u32 %s4, 4
      %s121 = int_to_ptr.hbm [resolvable:$true] %s120
      %123 = dma.vmem_to_hbm [thread:$0]  %s119, 128, %s121, [#allocation9]
    $region29: #{bernoulli_head.1} parent=1 // pred_fallthru
      _
    // Predicated region
    $region30: #{bernoulli_head.1} parent=1 // pred_check
      _
    $region31: #{bernoulli_head.1} parent=1 // pred_check_branch
      %125 = sbr.rel (0) target = $region33
    $region32: #{bernoulli_head.1} parent=1 // pred_region
      %127 = dma.done [#allocation4], 128
    $region33: #{bernoulli_head.1} parent=1 // pred_fallthru
      _
    // Predicated region
    $region34: #{bernoulli_head.1} parent=1 // pred_check
      _
    $region35: #{bernoulli_head.1} parent=1 // pred_check_branch
      %129 = sbr.rel (0) target = $region37
    $region36: #{bernoulli_head.1} parent=1 // pred_region
      %131 = dma.done [#allocation9], 128
    $region37: #{bernoulli_head.1} parent=1 // pred_fallthru
      _
    %132 = vsyncpa [#allocation3], 1
    %133 = vsyncpa [#allocation6], 1
    %134 = vsyncpa [#allocation4], 1
    %135 = vsyncpa [#allocation9], 1

</llo_original>
